<compile_context>
chip_gen: v7x
topology: tpu7x:2x2x1
jax: 0.10.0
libtpu: 0.0.40
codegen_flags: <defaults>
</compile_context>

<pallas_src>
import numpy as np
import jax
import jax.numpy as jnp
from jax.experimental import pallas as pl
from jax.experimental.pallas import tpu as pltpu

_LANE = 128
_SUBLANE = 8


def _make_outconv_kernel(c_in, c_out):
    """Unrolled VPU FMA kernel: y[o] = sum_i w[o, i] * x[i] + b[o]."""

    def kernel(w_ref, b_ref, x_ref, o_ref):
        # w_ref: (c_out, c_in) SMEM    b_ref: (c_out,) SMEM
        # x_ref: (1, c_in, tsub, 128) VMEM    o_ref: (1, c_out, tsub, 128) VMEM
        slab = x_ref.shape[2:]
        accs = [jnp.zeros(slab, jnp.float32) for _ in range(c_out)]
        for i in range(c_in):
            xi = x_ref[0, i].astype(jnp.float32)          # dense (tsub, 128) slab, loaded once
            for o in range(c_out):
                accs[o] = accs[o] + xi * w_ref[o, i]      # scalar-from-SMEM broadcast FMA
        for o in range(c_out):
            o_ref[0, o] = (accs[o] + b_ref[o]).astype(o_ref.dtype)

    return kernel


def _plan_spatial_tile(n, s_blocks, c_in, c_out, itemsize):
    """Pick tsub = number of 128-lane spatial groups per block, from a byte budget."""
    step_hbm_bytes = (c_in + c_out) * _LANE * itemsize       # HBM bytes per sublane-group
    # (1) ~2 MiB of HBM traffic per grid step amortizes the ~0.35 us per-step overhead.
    tsub = max(1, (2 << 20) // step_hbm_bytes)
    # (2) Double-buffered VMEM footprint 2*(Cin+Cout)*tsub*128*itemsize <= ~12 MiB: fits the
    #     16 MiB scoped-VMEM default on v5e and leaves ample headroom on v7x's 64 MiB.
    tsub = min(tsub, (12 << 20) // (2 * step_hbm_bytes))
    # (3) Keep >= ~8 total grid steps so v7x's two TensorCores both get work.
    chunks_per_sample = max(1, pl.cdiv(8, max(n, 1)))
    tsub = min(tsub, max(1, s_blocks // chunks_per_sample))
    # (4) Sublane-align (dense (8,128) tiles, unmasked vst) and clamp to the extent.
    if tsub >= _SUBLANE:
        tsub = (tsub // _SUBLANE) * _SUBLANE
    return max(1, min(tsub, s_blocks))


def out_conv(x_ncdhw, weight, bias):
    """x_ncdhw: (N, Cin, D, H, W); weight: (Cout, Cin); bias: (Cout,).
    Same forward semantics as nn.Conv3d(Cin, Cout, kernel_size=1)."""
    n, c_in, d, h, w = x_ncdhw.shape
    c_out = weight.shape[0]
    s = d * h * w
    sb = pl.cdiv(s, _LANE)                                   # 128-lane spatial groups
    itemsize = jnp.dtype(x_ncdhw.dtype).itemsize

    x = x_ncdhw.reshape(n, c_in, s)                          # merge trailing contiguous dims
    if s != sb * _LANE:
        # TODO(synk): rare path (D*H*W not a multiple of 128) pays one extra HBM pass for padding.
        x = jnp.pad(x, ((0, 0), (0, 0), (0, sb * _LANE - s)))
    x = x.reshape(n, c_in, sb, _LANE)                        # lane- and sublane-dense 4D layout

    tsub = _plan_spatial_tile(n, sb, c_in, c_out, itemsize)
    grid = (n, pl.cdiv(sb, tsub))                            # partial tail block is auto-masked

    out = pl.pallas_call(
        _make_outconv_kernel(c_in, c_out),
        out_shape=jax.ShapeDtypeStruct((n, c_out, sb, _LANE), x_ncdhw.dtype),
        grid=grid,
        in_specs=[
            pl.BlockSpec(memory_space=pltpu.MemorySpace.SMEM),   # weight (Cout, Cin), whole array
            pl.BlockSpec(memory_space=pltpu.MemorySpace.SMEM),   # bias (Cout,), whole array
            pl.BlockSpec((1, c_in, tsub, _LANE), lambda i, j: (i, 0, j, 0)),
        ],
        out_specs=pl.BlockSpec((1, c_out, tsub, _LANE), lambda i, j: (i, 0, j, 0)),
        compiler_params=pltpu.CompilerParams(
            dimension_semantics=("parallel", "parallel")),
        cost_estimate=pl.CostEstimate(
            flops=2 * n * s * c_in * c_out,
            transcendentals=0,
            bytes_accessed=itemsize * n * s * (c_in + c_out)),
    )(weight.astype(jnp.float32), bias.astype(jnp.float32), x)

    out = out.reshape(n, c_out, sb * _LANE)
    if s != sb * _LANE:
        out = out[:, :, :s]
    return out.reshape(n, c_out, d, h, w)


def ref_out_conv(x_ncdhw, weight, bias):
    """Pure-JAX reference for the 1x1x1 conv."""
    y = jnp.einsum('ncdhw,oc->nodhw', x_ncdhw, weight)
    return y + bias[None, :, None, None, None]


if __name__ == "__main__":
    # Small shapes consistent with an OutConv head (many->few channels, modest 3D volume).
    N, C_IN, C_OUT = 2, 4, 2
    D = H = W = 16

    key = jax.random.PRNGKey(0)
    k_x, k_w, k_b = jax.random.split(key, 3)

    x = jax.random.normal(k_x, (N, C_IN, D, H, W), dtype=jnp.float32)
    # PyTorch Conv3d weight is (Cout, Cin, 1, 1, 1); the trailing singleton taps are dropped.
    w = 0.1 * jax.random.normal(k_w, (C_OUT, C_IN), dtype=jnp.float32)
    b = 0.05 * jax.random.normal(k_b, (C_OUT,), dtype=jnp.float32)

    out = jax.block_until_ready(out_conv(x, w, b))
    ref = jax.block_until_ready(ref_out_conv(x, w, b))

    np.testing.assert_allclose(np.asarray(out), np.asarray(ref), rtol=1e-5, atol=1e-5)
    assert out.shape == (N, C_OUT, D, H, W)
    print("KERNEL_OK")
</pallas_src>

<mosaic_0001>
module attributes {stable_mosaic.version = 11 : i64} {
  func.func @kernel(%arg0: i32, %arg1: i32, %arg2: memref<2x4xf32, #tpu.memory_space<smem>>, %arg3: memref<2xf32, #tpu.memory_space<smem>>, %arg4: memref<1x4x8x128xf32, #tpu.memory_space<vmem>>, %arg5: memref<1x2x8x128xf32, #tpu.memory_space<vmem>>) attributes {dimension_semantics = [#tpu.dimension_semantics<parallel>, #tpu.dimension_semantics<parallel>], iteration_bounds = array<i64: 2, 4>, scalar_prefetch = 0 : i64, scratch_operands = 0 : i64, tpu.core_type = #tpu.core_type<tc>, window_params = [{transform_indices = @transform_0, window_bounds = array<i64: 2, 4>}, {transform_indices = @transform_1, window_bounds = array<i64: 2>}, {transform_indices = @transform_2, window_bounds = array<i64: 1, 4, 8, 128>}, {transform_indices = @transform_3, window_bounds = array<i64: 1, 2, 8, 128>}]} {
    %cst = arith.constant 0.000000e+00 : f32
    %0 = vector.broadcast %cst : f32 to vector<8x128xf32>
    %cst_0 = arith.constant 0.000000e+00 : f32
    %1 = vector.broadcast %cst_0 : f32 to vector<8x128xf32>
    %c0 = arith.constant 0 : index
    %c0_1 = arith.constant 0 : index
    %c0_2 = arith.constant 0 : index
    %c0_3 = arith.constant 0 : index
    %2 = vector.load %arg4[%c0, %c0_1, %c0_2, %c0_3] : memref<1x4x8x128xf32, #tpu.memory_space<vmem>>, vector<1x1x8x128xf32>
    %3 = vector.shape_cast %2 : vector<1x1x8x128xf32> to vector<8x128xf32>
    %c0_4 = arith.constant 0 : index
    %c0_5 = arith.constant 0 : index
    %4 = memref.load %arg2[%c0_4, %c0_5] : memref<2x4xf32, #tpu.memory_space<smem>>
    %5 = vector.broadcast %4 : f32 to vector<8x128xf32>
    %6 = arith.mulf %3, %5 : vector<8x128xf32>
    %7 = arith.addf %0, %6 : vector<8x128xf32>
    %c1 = arith.constant 1 : index
    %c0_6 = arith.constant 0 : index
    %8 = memref.load %arg2[%c1, %c0_6] : memref<2x4xf32, #tpu.memory_space<smem>>
    %9 = vector.broadcast %8 : f32 to vector<8x128xf32>
    %10 = arith.mulf %3, %9 : vector<8x128xf32>
    %11 = arith.addf %1, %10 : vector<8x128xf32>
    %c0_7 = arith.constant 0 : index
    %c1_8 = arith.constant 1 : index
    %c0_9 = arith.constant 0 : index
    %c0_10 = arith.constant 0 : index
    %12 = vector.load %arg4[%c0_7, %c1_8, %c0_9, %c0_10] : memref<1x4x8x128xf32, #tpu.memory_space<vmem>>, vector<1x1x8x128xf32>
    %13 = vector.shape_cast %12 : vector<1x1x8x128xf32> to vector<8x128xf32>
    %c0_11 = arith.constant 0 : index
    %c1_12 = arith.constant 1 : index
    %14 = memref.load %arg2[%c0_11, %c1_12] : memref<2x4xf32, #tpu.memory_space<smem>>
    %15 = vector.broadcast %14 : f32 to vector<8x128xf32>
    %16 = arith.mulf %13, %15 : vector<8x128xf32>
    %17 = arith.addf %7, %16 : vector<8x128xf32>
    %c1_13 = arith.constant 1 : index
    %c1_14 = arith.constant 1 : index
    %18 = memref.load %arg2[%c1_13, %c1_14] : memref<2x4xf32, #tpu.memory_space<smem>>
    %19 = vector.broadcast %18 : f32 to vector<8x128xf32>
    %20 = arith.mulf %13, %19 : vector<8x128xf32>
    %21 = arith.addf %11, %20 : vector<8x128xf32>
    %c0_15 = arith.constant 0 : index
    %c2 = arith.constant 2 : index
    %c0_16 = arith.constant 0 : index
    %c0_17 = arith.constant 0 : index
    %22 = vector.load %arg4[%c0_15, %c2, %c0_16, %c0_17] : memref<1x4x8x128xf32, #tpu.memory_space<vmem>>, vector<1x1x8x128xf32>
    %23 = vector.shape_cast %22 : vector<1x1x8x128xf32> to vector<8x128xf32>
    %c0_18 = arith.constant 0 : index
    %c2_19 = arith.constant 2 : index
    %24 = memref.load %arg2[%c0_18, %c2_19] : memref<2x4xf32, #tpu.memory_space<smem>>
    %25 = vector.broadcast %24 : f32 to vector<8x128xf32>
    %26 = arith.mulf %23, %25 : vector<8x128xf32>
    %27 = arith.addf %17, %26 : vector<8x128xf32>
    %c1_20 = arith.constant 1 : index
    %c2_21 = arith.constant 2 : index
    %28 = memref.load %arg2[%c1_20, %c2_21] : memref<2x4xf32, #tpu.memory_space<smem>>
    %29 = vector.broadcast %28 : f32 to vector<8x128xf32>
    %30 = arith.mulf %23, %29 : vector<8x128xf32>
    %31 = arith.addf %21, %30 : vector<8x128xf32>
    %c0_22 = arith.constant 0 : index
    %c3 = arith.constant 3 : index
    %c0_23 = arith.constant 0 : index
    %c0_24 = arith.constant 0 : index
    %32 = vector.load %arg4[%c0_22, %c3, %c0_23, %c0_24] : memref<1x4x8x128xf32, #tpu.memory_space<vmem>>, vector<1x1x8x128xf32>
    %33 = vector.shape_cast %32 : vector<1x1x8x128xf32> to vector<8x128xf32>
    %c0_25 = arith.constant 0 : index
    %c3_26 = arith.constant 3 : index
    %34 = memref.load %arg2[%c0_25, %c3_26] : memref<2x4xf32, #tpu.memory_space<smem>>
    %35 = vector.broadcast %34 : f32 to vector<8x128xf32>
    %36 = arith.mulf %33, %35 : vector<8x128xf32>
    %37 = arith.addf %27, %36 : vector<8x128xf32>
    %c1_27 = arith.constant 1 : index
    %c3_28 = arith.constant 3 : index
    %38 = memref.load %arg2[%c1_27, %c3_28] : memref<2x4xf32, #tpu.memory_space<smem>>
    %39 = vector.broadcast %38 : f32 to vector<8x128xf32>
    %40 = arith.mulf %33, %39 : vector<8x128xf32>
    %41 = arith.addf %31, %40 : vector<8x128xf32>
    %c0_29 = arith.constant 0 : index
    %42 = memref.load %arg3[%c0_29] : memref<2xf32, #tpu.memory_space<smem>>
    %43 = vector.broadcast %42 : f32 to vector<8x128xf32>
    %44 = arith.addf %37, %43 : vector<8x128xf32>
    %c0_30 = arith.constant 0 : index
    %c0_31 = arith.constant 0 : index
    %c0_32 = arith.constant 0 : index
    %c0_33 = arith.constant 0 : index
    %45 = vector.load %arg5[%c0_30, %c0_31, %c0_32, %c0_33] : memref<1x2x8x128xf32, #tpu.memory_space<vmem>>, vector<1x1x8x128xf32>
    %46 = vector.shape_cast %45 : vector<1x1x8x128xf32> to vector<8x128xf32>
    %47 = vector.shape_cast %44 : vector<8x128xf32> to vector<1x1x8x128xf32>
    tpu.vector_store %arg5[%c0_30, %c0_31, %c0_32, %c0_33], %47 {strides = array<i32>} : memref<1x2x8x128xf32, #tpu.memory_space<vmem>>, vector<1x1x8x128xf32>,
    %c1_34 = arith.constant 1 : index
    %48 = memref.load %arg3[%c1_34] : memref<2xf32, #tpu.memory_space<smem>>
    %49 = vector.broadcast %48 : f32 to vector<8x128xf32>
    %50 = arith.addf %41, %49 : vector<8x128xf32>
    %c0_35 = arith.constant 0 : index
    %c1_36 = arith.constant 1 : index
    %c0_37 = arith.constant 0 : index
    %c0_38 = arith.constant 0 : index
    %51 = vector.load %arg5[%c0_35, %c1_36, %c0_37, %c0_38] : memref<1x2x8x128xf32, #tpu.memory_space<vmem>>, vector<1x1x8x128xf32>
    %52 = vector.shape_cast %51 : vector<1x1x8x128xf32> to vector<8x128xf32>
    %53 = vector.shape_cast %50 : vector<8x128xf32> to vector<1x1x8x128xf32>
    tpu.vector_store %arg5[%c0_35, %c1_36, %c0_37, %c0_38], %53 {strides = array<i32>} : memref<1x2x8x128xf32, #tpu.memory_space<vmem>>, vector<1x1x8x128xf32>,
    return
  }
  func.func @transform_0(%arg0: i32, %arg1: i32) -> (i32, i32) {
    %c0_i32 = arith.constant 0 : i32
    %c0_i32_0 = arith.constant 0 : i32
    %c0_i32_1 = arith.constant 0 : i32
    return %c0_i32, %c0_i32_0 : i32, i32
  }
  func.func @transform_1(%arg0: i32, %arg1: i32) -> i32 {
    %c0_i32 = arith.constant 0 : i32
    %c0_i32_0 = arith.constant 0 : i32
    return %c0_i32 : i32
  }
  func.func @transform_2(%arg0: i32, %arg1: i32) -> (i32, i32, i32, i32) {
    %c0_i32 = arith.constant 0 : i32
    %c0_i32_0 = arith.constant 0 : i32
    %c0_i32_1 = arith.constant 0 : i32
    return %arg0, %c0_i32, %arg1, %c0_i32_0 : i32, i32, i32, i32
  }
  func.func @transform_3(%arg0: i32, %arg1: i32) -> (i32, i32, i32, i32) {
    %c0_i32 = arith.constant 0 : i32
    %c0_i32_0 = arith.constant 0 : i32
    %c0_i32_1 = arith.constant 0 : i32
    return %arg0, %c0_i32, %arg1, %c0_i32_0 : i32, i32, i32, i32
  }
}

</mosaic_0001>

<llo_original>
// kernel: tpu_custom_call.1
$region0: #{tpu_custom_call.1}
  #allocation0 [shape = 'u32[]', space=smem, size = 0x4, offset = 0x4, fixed_abs, tag = 'smem constant byte address 0x4 - core index']
  #allocation1 [shape = 'u32[144,128]{1,0:T(1,128)}', space=vmem, size = 0x12000, scoped, tag = 'internal scratch']
  %s0 = inlined_call_operand.hbm [shape: f32[2,4], index: 0, kind: input, shape index: {}]
  %s1 = inlined_call_operand.vmem [shape: f32[2], index: 1, kind: input, shape index: {}]
  %s2 = inlined_call_operand.hbm [shape: f32[2,4,32,128], index: 2, kind: input, shape index: {}]
  %s3 = inlined_call_operand.hbm [shape: f32[2,2,32,128], index: 3, kind: output, shape index: {}]
  %s4 = sld [smem:[#allocation0]]
  $region57: #{tpu_custom_call.1} parent=0
    _
  %s6 = ssub.s32 1, %s4
  %s7 = scalar_select 0, %s6, %s4
  $region1: #{tpu_custom_call.1} parent=0
    #allocation2 [shape = 'u8[1024]{0}', space=smem, size = 0x400, scoped, tag = 'input window, operand 0, single buffered']
    #allocation3 [shape = 's32[2]{0}', space=sflag, size = 0x8, scoped, tag = 'scoped memory for tpu_custom_call.1']
    #allocation4 [shape = 's32[2]{0}', space=sflag, size = 0x8, scoped, tag = 'scoped memory for tpu_custom_call.1']
    #allocation5 [shape = 's32[2]{0}', space=sflag, size = 0x8, scoped, tag = 'scoped memory for tpu_custom_call.1']
    #allocation6 [shape = 's32[2]{0}', space=sflag, size = 0x8, scoped, tag = 'scoped memory for tpu_custom_call.1']
    #allocation7 [shape = 'u8[512]{0}', space=smem, size = 0x200, scoped, tag = 'input window, operand 1, single buffered']
    #allocation8 [shape = 'u8[32768]{0}', space=vmem, size = 0x8000, scoped, tag = 'input window, operand 2']
    #allocation9 [shape = 'u8[16384]{0}', space=vmem, size = 0x4000, scoped, tag = 'output window, operand 0']
    %8 = vsyncpa [#allocation5], 0
    %9 = vsyncpa [#allocation6], 0
    %10 = vsyncpa [#allocation3], 0
    %s11 = scalar_lea.sflag [#allocation3], 1
    %12 = vsyncpa %s11, 0
    %13 = vsyncpa [#allocation4], 0
    %s14 = scalar_lea.sflag [#allocation4], 1
    %15 = vsyncpa %s14, 0
    loop: start=0, step=1, limit=10
    $region2: #{tpu_custom_call.1} parent=1 // loop_pre_header
      _
    $region3: #{tpu_custom_call.1} parent=1 // loop_header
      %s17 = sphi 0, %s21
      %p18 = scmp.ge.s32.totalorder %s17, 10
      %s24 = sphi 0, %s36
      %s25 = sphi 0, %s32
      %s26 = sphi 0, %s24
      %s27 = sphi 0, %s25
      %s28 = sphi 0, %s26
      %s29 = sphi 0, %s27
      %s37 = sphi 0, %s37
      %s39 = sphi 0, %s37
      %s40 = sphi 0, %s39
      %s54 = sphi 0, %s40
      %s58 = sphi 0, %s58
      %s60 = sphi 0, %s58
      %s61 = sphi 0, %s60
      %s75 = sphi 0, %s61
      %s83 = sphi 0, %s85
      %s86 = sphi 0, %s83
      %s87 = sphi 0, %s86
      %s103 = sphi 0, %s87
      %s111 = sphi 0, %s113
      %s114 = sphi 0, %s111
      %s115 = sphi 0, %s114
      %s131 = sphi 0, %s115
    $region4: #{tpu_custom_call.1} parent=1 // loop_header_branch
      %20 = sbr.rel (%p18) target = $region8
    $region5: #{tpu_custom_call.1} parent=1 // loop_body
      %s22 = ssub.s32 %s17, 1
      %s23 = ssub.s32 %s17, 2
      %s30 = sadd.s32 1, %s25
      %p31 = scmp.ge.s32.totalorder %s30, 4
      %s32 = scalar_select %p31, 0, %s30
      %s33 = sadd.s32 1, %s24
      %s34 = scalar_select %p31, %s33, %s24
      %p35 = scmp.ge.s32.totalorder %s34, 2
      %s36 = scalar_select %p35, 0, %s34
      %s38 = sadd.s32 %s37, 1
      %p41 = scmp.eq.s32.totalorder %s17, 7
      %p42 = scmp.ne.s32.totalorder %s37, %s39
      %p43 = scmp.eq.s32.totalorder %s17, 0
      %p44 = por %p42, %p43
      %p45 = scmp.ne.s32.totalorder %s37, %s39
      %p46 = scmp.eq.s32.totalorder %s22, 7
      %p47 = por %p45, %p46
      %p48 = scmp.ne.s32.totalorder %s39, %s40
      %p49 = scmp.eq.s32.totalorder %s22, 0
      %p50 = por %p48, %p49
      %p51 = scmp.ne.s32.totalorder %s39, %s40
      %p52 = scmp.eq.s32.totalorder %s23, 7
      %p53 = por %p51, %p52
      %p55 = scmp.ne.s32.totalorder %s40, %s54
      %p56 = scmp.eq.s32.totalorder %s23, 0
      %p57 = por %p55, %p56
      %s59 = sadd.s32 %s58, 1
      %p62 = scmp.eq.s32.totalorder %s17, 7
      %p63 = scmp.ne.s32.totalorder %s58, %s60
      %p64 = scmp.eq.s32.totalorder %s17, 0
      %p65 = por %p63, %p64
      %p66 = scmp.ne.s32.totalorder %s58, %s60
      %p67 = scmp.eq.s32.totalorder %s22, 7
      %p68 = por %p66, %p67
      %p69 = scmp.ne.s32.totalorder %s60, %s61
      %p70 = scmp.eq.s32.totalorder %s22, 0
      %p71 = por %p69, %p70
      %p72 = scmp.ne.s32.totalorder %s60, %s61
      %p73 = scmp.eq.s32.totalorder %s23, 7
      %p74 = por %p72, %p73
      %p76 = scmp.ne.s32.totalorder %s61, %s75
      %p77 = scmp.eq.s32.totalorder %s23, 0
      %p78 = por %p76, %p77
      %s79 = ssub.s32 %s24, %s36
      %s80 = ssub.s32 %s25, %s32
      %s81 = sor.u32 %s79, %s80
      %p82 = scmp.eq.s32.totalorder %s81, 0
      %s84 = sadd.s32 %s83, 1
      %s85 = scalar_select %p82, %s83, %s84
      %p88 = pneg %p82
      %p89 = scmp.eq.s32.totalorder %s17, 7
      %p90 = por %p88, %p89
      %p91 = scmp.ne.s32.totalorder %s83, %s86
      %p92 = scmp.eq.s32.totalorder %s17, 0
      %p93 = por %p91, %p92
      %p94 = scmp.ne.s32.totalorder %s83, %s86
      %p95 = scmp.eq.s32.totalorder %s22, 7
      %p96 = por %p94, %p95
      %p97 = scmp.ne.s32.totalorder %s86, %s87
      %p98 = scmp.eq.s32.totalorder %s22, 0
      %p99 = por %p97, %p98
      %p100 = scmp.ne.s32.totalorder %s86, %s87
      %p101 = scmp.eq.s32.totalorder %s23, 7
      %p102 = por %p100, %p101
      %p104 = scmp.ne.s32.totalorder %s87, %s103
      %p105 = scmp.eq.s32.totalorder %s23, 0
      %p106 = por %p104, %p105
      %s107 = ssub.s32 %s24, %s36
      %s108 = ssub.s32 %s25, %s32
      %s109 = sor.u32 %s107, %s108
      %p110 = scmp.eq.s32.totalorder %s109, 0
      %s112 = sadd.s32 %s111, 1
      %s113 = scalar_select %p110, %s111, %s112
      %p116 = pneg %p110
      %p117 = scmp.eq.s32.totalorder %s17, 7
      %p118 = por %p116, %p117
      %p119 = scmp.ne.s32.totalorder %s111, %s114
      %p120 = scmp.eq.s32.totalorder %s17, 0
      %p121 = por %p119, %p120
      %p122 = scmp.ne.s32.totalorder %s111, %s114
      %p123 = scmp.eq.s32.totalorder %s22, 7
      %p124 = por %p122, %p123
      %p125 = scmp.ne.s32.totalorder %s114, %s115
      %p126 = scmp.eq.s32.totalorder %s22, 0
      %p127 = por %p125, %p126
      %p128 = scmp.ne.s32.totalorder %s114, %s115
      %p129 = scmp.eq.s32.totalorder %s23, 7
      %p130 = por %p128, %p129
      %p132 = scmp.ne.s32.totalorder %s115, %s131
      %p133 = scmp.eq.s32.totalorder %s23, 0
      %p134 = por %p132, %p133
      %p135 = scmp.le.s32.totalorder 1, %s17
      %p136 = scmp.lt.s32.totalorder %s17, 9
      %p137 = pnand %p135, %p136
      %p138 = pneg %p137
      // Predicated region
      $region9: #{tpu_custom_call.1} parent=5 // pred_check
        _
      $region10: #{tpu_custom_call.1} parent=5 // pred_check_branch
        %140 = sbr.rel (%p137) target = $region12
      $region11: #{tpu_custom_call.1} parent=5 // pred_region
        %s141 = ssub.s32 %s17, 1
        // Predicated region
        $region13: #{tpu_custom_call.1} parent=11 // pred_check
          %p142 = pneg %p50
        $region14: #{tpu_custom_call.1} parent=11 // pred_check_branch
          %144 = sbr.rel (%p142) target = $region16
        $region15: #{tpu_custom_call.1} parent=11 // pred_region
          %s146 = ssub.s32 32, 32
          %147 = vsyncadd [#allocation5], %s146
          %150 = dma.hbm_to_smem %s0, 32, [#allocation2], [#allocation5]
        $region16: #{tpu_custom_call.1} parent=11 // pred_fallthru
          _
        // Predicated region
        $region17: #{tpu_custom_call.1} parent=11 // pred_check
          %p151 = pneg %p71
        $region18: #{tpu_custom_call.1} parent=11 // pred_check_branch
          %153 = sbr.rel (%p151) target = $region20
        $region19: #{tpu_custom_call.1} parent=11 // pred_region
          %s155 = ssub.s32 16, 16
          %156 = vsyncadd [#allocation6], %s155
          %s158 = sshll.u32 %s1, 4
          %s159 = int_to_ptr.vmem [resolvable:$true] %s158
          %161 = dma.vmem_to_smem %s159, 16, [#allocation7], [#allocation6]
        $region20: #{tpu_custom_call.1} parent=11 // pred_fallthru
          _
      $region12: #{tpu_custom_call.1} parent=5 // pred_fallthru
        _
      %p162 = scmp.lt.s32.totalorder %s17, 8
      // Predicated region
      $region21: #{tpu_custom_call.1} parent=5 // pred_check
        %p163 = pneg %p162
      $region22: #{tpu_custom_call.1} parent=5 // pred_check_branch
        %165 = sbr.rel (%p163) target = $region24
      $region23: #{tpu_custom_call.1} parent=5 // pred_region
        // Predicated region
        $region25: #{tpu_custom_call.1} parent=23 // pred_check
          %p166 = pneg %p93
        $region26: #{tpu_custom_call.1} parent=23 // pred_check_branch
          %168 = sbr.rel (%p166) target = $region28
        $region27: #{tpu_custom_call.1} parent=23 // pred_region
          %s169 = sand.u32 %s83, 1
          %s170 = scalar_lea.sflag [#allocation3], %s169
          %s171 = sand.u32 %s83, 1
          %s172 = smul.addr %s171, 32
          %s173 = scalar_lea.vmem [#allocation8], %s172
          %s175 = ssub.s32 512, 512
          %176 = vsyncadd %s170, %s175
          %s177 = smul.addr %s24, 16
          %s178 = sadd.s32 %s25, %s177
          %s179 = smul.addr %s178, 128
          %s180 = scalar_lea.hbm %s2, %s179
          %s181 = sshll.u32 %s173, 4
          %s182 = int_to_ptr.vmem [resolvable:$true] %s181
          %187 = dma.hbm_to_vmem [thread:$0]  %s180, 512, %s182, %s170, 512, 128, 8
        $region28: #{tpu_custom_call.1} parent=23 // pred_fallthru
          _
      $region24: #{tpu_custom_call.1} parent=5 // pred_fallthru
        _
      %p188 = scmp.le.s32.totalorder 1, %s17
      %p189 = scmp.lt.s32.totalorder %s17, 9
      %p190 = pnand %p188, %p189
      %p191 = pneg %p190
      // Predicated region
      $region29: #{tpu_custom_call.1} parent=5 // pred_check
        _
      $region30: #{tpu_custom_call.1} parent=5 // pred_check_branch
        %193 = sbr.rel (%p190) target = $region32
      $region31: #{tpu_custom_call.1} parent=5 // pred_region
        %s194 = ssub.s32 %s17, 1
        // Predicated region
        $region33: #{tpu_custom_call.1} parent=31 // pred_check
          %p195 = pneg %p50
        $region34: #{tpu_custom_call.1} parent=31 // pred_check_branch
          %197 = sbr.rel (%p195) target = $region36
        $region35: #{tpu_custom_call.1} parent=31 // pred_region
          %198 = dma.done [#allocation5], 32
        $region36: #{tpu_custom_call.1} parent=31 // pred_fallthru
          _
        // Predicated region
        $region37: #{tpu_custom_call.1} parent=31 // pred_check
          %p199 = pneg %p71
        $region38: #{tpu_custom_call.1} parent=31 // pred_check_branch
          %201 = sbr.rel (%p199) target = $region40
        $region39: #{tpu_custom_call.1} parent=31 // pred_region
          %202 = dma.done [#allocation6], 16
        $region40: #{tpu_custom_call.1} parent=31 // pred_fallthru
          _
        %s203 = sand.u32 %s86, 1
        %s204 = scalar_lea.sflag [#allocation3], %s203
        %s205 = sand.u32 %s86, 1
        %s206 = smul.addr %s205, 32
        %s207 = scalar_lea.vmem [#allocation8], %s206
        // Predicated region
        $region41: #{tpu_custom_call.1} parent=31 // pred_check
          %p208 = pneg %p99
        $region42: #{tpu_custom_call.1} parent=31 // pred_check_branch
          %210 = sbr.rel (%p208) target = $region44
        $region43: #{tpu_custom_call.1} parent=31 // pred_region
          %211 = dma.done %s204, 512
        $region44: #{tpu_custom_call.1} parent=31 // pred_fallthru
          _
        %212 = sfence
        %p213 = pneg %p50
        %p214 = pneg %p47
        %p215 = pneg %p71
        %p216 = pneg %p68
        %s217 = sand.u32 %s86, 1
        %s218 = scalar_lea.sflag [#allocation3], %s217
        %s219 = sand.u32 %s86, 1
        %s220 = smul.addr %s219, 32
        %s221 = scalar_lea.vmem [#allocation8], %s220
        %p222 = pneg %p99
        %p223 = pneg %p96
        %p224 = pneg %p127
        %p225 = pneg %p124
        %s226 = sand.u32 %s114, 1
        %s227 = scalar_lea.sflag [#allocation4], %s226
        %s228 = sand.u32 %s114, 1
        %s229 = smul.addr %s228, 16
        %s230 = scalar_lea.vmem [#allocation9], %s229
        %v231 = vld [vmem:[%s207] sm:$0xff]
        %s232 = sld [smem:[#allocation2]]
        %v233 = vstv %s232
        %v234 = vmul.f32 %v231, %v233
        %v235 = vadd.f32 %v234, 0.0
        %s236 = sld [smem:[#allocation2 + $0x80]]
        %v237 = vstv %s236
        %v238 = vmul.f32 %v231, %v237
        %v239 = vadd.f32 %v238, 0.0
        %s240 = scalar_lea.vmem %s207, 8 [#allocation8]
        %v241 = vld [vmem:[%s240] sm:$0xff]
        %s242 = sld [smem:[#allocation2 + $0x1]]
        %v243 = vstv %s242
        %v244 = vmul.f32 %v241, %v243
        %v245 = vadd.f32 %v235, %v244
        %s246 = sld [smem:[#allocation2 + $0x81]]
        %v247 = vstv %s246
        %v248 = vmul.f32 %v241, %v247
        %v249 = vadd.f32 %v239, %v248
        %s250 = scalar_lea.vmem %s207, 16 [#allocation8]
        %v251 = vld [vmem:[%s250] sm:$0xff]
        %s252 = sld [smem:[#allocation2 + $0x2]]
        %v253 = vstv %s252
        %v254 = vmul.f32 %v251, %v253
        %v255 = vadd.f32 %v245, %v254
        %s256 = sld [smem:[#allocation2 + $0x82]]
        %v257 = vstv %s256
        %v258 = vmul.f32 %v251, %v257
        %v259 = vadd.f32 %v249, %v258
        %s260 = scalar_lea.vmem %s207, 24 [#allocation8]
        %v261 = vld [vmem:[%s260] sm:$0xff]
        %s262 = sld [smem:[#allocation2 + $0x3]]
        %v263 = vstv %s262
        %v264 = vmul.f32 %v261, %v263
        %v265 = vadd.f32 %v255, %v264
        %s266 = sld [smem:[#allocation2 + $0x83]]
        %v267 = vstv %s266
        %v268 = vmul.f32 %v261, %v267
        %v269 = vadd.f32 %v259, %v268
        %s270 = sld [smem:[#allocation7]]
        %v271 = vstv %s270
        %v272 = vadd.f32 %v265, %v271
        %273 = vst [vmem:[%s230] sm:$0xff] %v272
        %s274 = sld [smem:[#allocation7 + $0x1]]
        %v275 = vstv %s274
        %v276 = vadd.f32 %v269, %v275
        %s277 = scalar_lea.vmem %s230, 8 [#allocation9]
        %278 = vst [vmem:[%s277] sm:$0xff] %v276
        %s279 = sand.u32 %s114, 1
        %s280 = scalar_lea.sflag [#allocation4], %s279
        %s281 = sand.u32 %s114, 1
        %s282 = smul.addr %s281, 16
        %s283 = scalar_lea.vmem [#allocation9], %s282
        // Predicated region
        $region45: #{tpu_custom_call.1} parent=31 // pred_check
          %p284 = pneg %p124
        $region46: #{tpu_custom_call.1} parent=31 // pred_check_branch
          %286 = sbr.rel (%p284) target = $region48
        $region47: #{tpu_custom_call.1} parent=31 // pred_region
          %s288 = ssub.s32 256, 256
          %289 = vsyncadd %s280, %s288
          %s290 = smul.addr %s26, 8
          %s291 = sadd.s32 %s27, %s290
          %s292 = smul.addr %s291, 128
          %s293 = scalar_lea.hbm %s3, %s292
          %s294 = sshll.u32 %s283, 4
          %s295 = int_to_ptr.vmem [resolvable:$true] %s294
          %300 = dma.vmem_to_hbm [thread:$0]  %s295, 256, %s293, %s280, 128, 512, 8
        $region48: #{tpu_custom_call.1} parent=31 // pred_fallthru
          _
      $region32: #{tpu_custom_call.1} parent=5 // pred_fallthru
        _
      %p301 = scmp.le.s32.totalorder 2, %s17
      // Predicated region
      $region49: #{tpu_custom_call.1} parent=5 // pred_check
        %p302 = pneg %p301
      $region50: #{tpu_custom_call.1} parent=5 // pred_check_branch
        %304 = sbr.rel (%p302) target = $region52
      $region51: #{tpu_custom_call.1} parent=5 // pred_region
        %s305 = ssub.s32 %s17, 2
        // Predicated region
        $region53: #{tpu_custom_call.1} parent=51 // pred_check
          %p306 = pneg %p130
        $region54: #{tpu_custom_call.1} parent=51 // pred_check_branch
          %308 = sbr.rel (%p306) target = $region56
        $region55: #{tpu_custom_call.1} parent=51 // pred_region
          %s309 = sand.u32 %s115, 1
          %s310 = scalar_lea.sflag [#allocation4], %s309
          %s311 = sand.u32 %s115, 1
          %s312 = smul.addr %s311, 16
          %s313 = scalar_lea.vmem [#allocation9], %s312
          %314 = dma.done %s310, 256
        $region56: #{tpu_custom_call.1} parent=51 // pred_fallthru
          _
      $region52: #{tpu_custom_call.1} parent=5 // pred_fallthru
        _
    $region6: #{tpu_custom_call.1} parent=1 // loop_footer
      %s21 = sadd.s32 1, %s17
    $region7: #{tpu_custom_call.1} parent=1 // loop_footer_branch
      %16 = sbr.rel target = $region3
    $region8: #{tpu_custom_call.1} parent=1 // loop_exit
      _
    %315 = vsyncpa [#allocation3], 1
    %s316 = scalar_lea.sflag [#allocation3], 1
    %317 = vsyncpa %s316, 1
    %318 = vsyncpa [#allocation4], 1
    %s319 = scalar_lea.sflag [#allocation4], 1
    %320 = vsyncpa %s319, 1
    %321 = vsyncpa [#allocation5], 1
    %s322 = scalar_lea.sflag [#allocation5], 1
    %323 = vsyncpa %s322, 1
    %324 = vsyncpa [#allocation6], 1
    %s325 = scalar_lea.sflag [#allocation6], 1
    %326 = vsyncpa %s325, 1

</llo_original>
